<compile_context>
chip_gen: v7x
topology: tpu7x:2x2x1
jax: 0.10.0
libtpu: 0.0.40
codegen_flags: <defaults>
</compile_context>

<pallas_src>
import functools

import jax
import jax.numpy as jnp
from jax.experimental import pallas as pl
from jax.experimental.pallas import tpu as pltpu


def _round_up(x: int, m: int) -> int:
    return (x + m - 1) // m * m


def _quantile_loss_kernel(preds_ref, target_ref, out_ref, acc_ref, *, quantiles):
    # grid = (num_partials, steps); axis 1 is the sequential reduction axis.
    i = pl.program_id(1)

    @pl.when(i == 0)
    def _init():
        acc_ref[...] = jnp.zeros_like(acc_ref)

    t = target_ref[0].astype(jnp.float32)                  # (RB, 128)
    tile_sum = None
    for qi, q in enumerate(quantiles):                     # unrolled; Q is tiny
        e = t - preds_ref[qi].astype(jnp.float32)          # (RB, 128)
        pb = jnp.maximum((q - 1.0) * e, q * e)             # scalar-literal weights
        tile_sum = pb if tile_sum is None else tile_sum + pb
    acc_ref[...] += tile_sum                               # elementwise accumulate

    @pl.when(i == pl.num_programs(1) - 1)
    def _finalize():
        out_ref[...] = jnp.full(out_ref.shape, jnp.sum(acc_ref[...]),
                                dtype=out_ref.dtype)


@functools.partial(jax.jit,
                   static_argnames=("quantiles", "block_cols", "num_partials"))
def _quantile_loss_impl(preds, target, *, quantiles, block_cols, num_partials):
    nq = len(quantiles)
    n_rows = target.size
    assert preds.size == n_rows * nq, "preds/target size mismatch"

    # Lane-dense re-layout: put the big N axis on the lane dimension.
    preds_t = preds.reshape(n_rows, nq).T          # (Q, N)  -- one fused copy pass
    target_t = target.reshape(1, n_rows)           # (1, N)  -- free reshape

    # Columns per grid step: multiple of 2048 (=16 sublanes x 128 lanes) so the
    # (RB, 128) view is tile-aligned for both 32-bit and 16-bit input dtypes.
    bn = min(_round_up(block_cols, 2048), _round_up(n_rows, 2048))
    n_cols = _round_up(n_rows, bn * num_partials)
    pad = n_cols - n_rows
    if pad:
        # Zero rows contribute exactly 0 to the pinball sum; under jit this
        # fuses with the transpose (no separate full-array pad pass).
        preds_t = jnp.pad(preds_t, ((0, 0), (0, pad)))
        target_t = jnp.pad(target_t, ((0, 0), (0, pad)))

    rb = bn // 128
    preds3 = preds_t.reshape(nq, n_cols // 128, 128)
    target3 = target_t.reshape(1, n_cols // 128, 128)
    steps = n_cols // (bn * num_partials)

    p_item = jnp.dtype(preds3.dtype).itemsize
    t_item = jnp.dtype(target3.dtype).itemsize
    vmem_bytes = (2 * nq * bn * p_item     # double-buffered preds tiles
                  + 2 * bn * t_item        # double-buffered target tiles
                  + bn * 4                 # f32 accumulator
                  + (2 << 20))             # headroom
    vmem_limit = int(min(max(vmem_bytes, 16 * 2**20), 32 * 2**20))

    kernel = functools.partial(_quantile_loss_kernel, quantiles=quantiles)

    out = pl.pallas_call(
        kernel,
        out_shape=jax.ShapeDtypeStruct((num_partials, 1, 1), jnp.float32),
        grid=(num_partials, steps),
        in_specs=[
            pl.BlockSpec((nq, rb, 128), lambda p, i: (0, p * steps + i, 0)),
            pl.BlockSpec((1, rb, 128), lambda p, i: (0, p * steps + i, 0)),
        ],
        out_specs=pl.BlockSpec((1, 1, 1), lambda p, i: (p, 0, 0)),
        scratch_shapes=[pltpu.VMEM((rb, 128), jnp.float32)],
        compiler_params=pltpu.CompilerParams(
            dimension_semantics=("parallel", "arbitrary"),
            vmem_limit_bytes=vmem_limit,
        ),
    )(preds3, target3)

    return jnp.sum(out[:, 0, 0]) / jnp.float32(n_rows)


def quantile_loss(preds, target, quantiles, *,
                  block_cols=256 * 1024, num_partials=2):
    """Pallas equivalent of QuantileLoss.forward(preds, target)."""
    q_tuple = tuple(float(q) for q in quantiles)
    return _quantile_loss_impl(preds, target, quantiles=q_tuple,
                               block_cols=block_cols,
                               num_partials=num_partials)


def quantile_loss_ref(preds, target, quantiles):
    nq = len(quantiles)
    p = preds.reshape(-1, nq).astype(jnp.float32)
    t = target.reshape(-1).astype(jnp.float32)
    losses = []
    for i, q in enumerate(quantiles):
        e = t - p[:, i]
        losses.append(jnp.maximum((q - 1.0) * e, q * e)[:, None])
    return jnp.mean(jnp.sum(jnp.concatenate(losses, axis=1), axis=1))


if __name__ == "__main__":
    key = jax.random.PRNGKey(0)
    quantiles = (0.1, 0.5, 0.9)

    # Small shapes consistent with the module: (batch=8, seq=32, n_quantiles=3)
    batch, seq = 8, 32
    k1, k2 = jax.random.split(key)
    preds = jax.random.normal(k1, (batch, seq, len(quantiles)), dtype=jnp.float32)
    target = jax.random.normal(k2, (batch, seq), dtype=jnp.float32)

    loss = quantile_loss(preds, target, quantiles)
    jax.block_until_ready(loss)

    ref = quantile_loss_ref(preds, target, quantiles)
    assert jnp.allclose(loss, ref, rtol=1e-5, atol=1e-5), (loss, ref)

    print("KERNEL_OK")
</pallas_src>

<mosaic_0001>
module attributes {stable_mosaic.version = 11 : i64} {
  func.func @_quantile_loss_kernel(%arg0: i32, %arg1: i32, %arg2: memref<3x16x128xf32, #tpu.memory_space<vmem>>, %arg3: memref<1x16x128xf32, #tpu.memory_space<vmem>>, %arg4: memref<1x1x1xf32, #tpu.memory_space<vmem>>, %arg5: memref<16x128xf32, #tpu.memory_space<vmem>>) attributes {dimension_semantics = [#tpu.dimension_semantics<parallel>, #tpu.dimension_semantics<arbitrary>], iteration_bounds = array<i64: 2, 1>, scalar_prefetch = 0 : i64, scratch_operands = 1 : i64, tpu.core_type = #tpu.core_type<tc>, window_params = [{transform_indices = @transform_0, window_bounds = array<i64: 3, 16, 128>}, {transform_indices = @transform_1, window_bounds = array<i64: 1, 16, 128>}, {transform_indices = @transform_2, window_bounds = array<i64: 1, 1, 1>}]} {
    %c0_i32 = arith.constant 0 : i32
    %0 = arith.cmpi eq, %arg1, %c0_i32 : i32
    %1 = arith.extui %0 : i1 to i32
    %c0_i32_0 = arith.constant 0 : i32
    %2 = arith.cmpi ne, %1, %c0_i32_0 : i32
    scf.if %2 {
      %cst_21 = arith.constant 0.000000e+00 : f32
      %37 = vector.broadcast %cst_21 : f32 to vector<16x128xf32>
      %c0_22 = arith.constant 0 : index
      %c0_23 = arith.constant 0 : index
      %38 = vector.load %arg5[%c0_22, %c0_23] : memref<16x128xf32, #tpu.memory_space<vmem>>, vector<16x128xf32>
      tpu.vector_store %arg5[%c0_22, %c0_23], %37 {strides = array<i32>} : memref<16x128xf32, #tpu.memory_space<vmem>>, vector<16x128xf32>,
    } else {
    }
    %c0 = arith.constant 0 : index
    %c0_1 = arith.constant 0 : index
    %c0_2 = arith.constant 0 : index
    %3 = vector.load %arg3[%c0, %c0_1, %c0_2] : memref<1x16x128xf32, #tpu.memory_space<vmem>>, vector<1x16x128xf32>
    %4 = vector.shape_cast %3 : vector<1x16x128xf32> to vector<16x128xf32>
    %c0_3 = arith.constant 0 : index
    %c0_4 = arith.constant 0 : index
    %c0_5 = arith.constant 0 : index
    %5 = vector.load %arg2[%c0_3, %c0_4, %c0_5] : memref<3x16x128xf32, #tpu.memory_space<vmem>>, vector<1x16x128xf32>
    %6 = vector.shape_cast %5 : vector<1x16x128xf32> to vector<16x128xf32>
    %7 = arith.subf %4, %6 : vector<16x128xf32>
    %cst = arith.constant -0.899999976 : f32
    %8 = vector.broadcast %cst : f32 to vector<16x128xf32>
    %9 = arith.mulf %8, %7 : vector<16x128xf32>
    %cst_6 = arith.constant 1.000000e-01 : f32
    %10 = vector.broadcast %cst_6 : f32 to vector<16x128xf32>
    %11 = arith.mulf %10, %7 : vector<16x128xf32>
    %12 = arith.maximumf %9, %11 : vector<16x128xf32>
    %c1 = arith.constant 1 : index
    %c0_7 = arith.constant 0 : index
    %c0_8 = arith.constant 0 : index
    %13 = vector.load %arg2[%c1, %c0_7, %c0_8] : memref<3x16x128xf32, #tpu.memory_space<vmem>>, vector<1x16x128xf32>
    %14 = vector.shape_cast %13 : vector<1x16x128xf32> to vector<16x128xf32>
    %15 = arith.subf %4, %14 : vector<16x128xf32>
    %cst_9 = arith.constant -5.000000e-01 : f32
    %16 = vector.broadcast %cst_9 : f32 to vector<16x128xf32>
    %17 = arith.mulf %16, %15 : vector<16x128xf32>
    %cst_10 = arith.constant 5.000000e-01 : f32
    %18 = vector.broadcast %cst_10 : f32 to vector<16x128xf32>
    %19 = arith.mulf %18, %15 : vector<16x128xf32>
    %20 = arith.maximumf %17, %19 : vector<16x128xf32>
    %21 = arith.addf %12, %20 : vector<16x128xf32>
    %c2 = arith.constant 2 : index
    %c0_11 = arith.constant 0 : index
    %c0_12 = arith.constant 0 : index
    %22 = vector.load %arg2[%c2, %c0_11, %c0_12] : memref<3x16x128xf32, #tpu.memory_space<vmem>>, vector<1x16x128xf32>
    %23 = vector.shape_cast %22 : vector<1x16x128xf32> to vector<16x128xf32>
    %24 = arith.subf %4, %23 : vector<16x128xf32>
    %cst_13 = arith.constant -1.000000e-01 : f32
    %25 = vector.broadcast %cst_13 : f32 to vector<16x128xf32>
    %26 = arith.mulf %25, %24 : vector<16x128xf32>
    %cst_14 = arith.constant 0.899999976 : f32
    %27 = vector.broadcast %cst_14 : f32 to vector<16x128xf32>
    %28 = arith.mulf %27, %24 : vector<16x128xf32>
    %29 = arith.maximumf %26, %28 : vector<16x128xf32>
    %30 = arith.addf %21, %29 : vector<16x128xf32>
    %c0_15 = arith.constant 0 : index
    %c0_16 = arith.constant 0 : index
    %31 = vector.load %arg5[%c0_15, %c0_16] : memref<16x128xf32, #tpu.memory_space<vmem>>, vector<16x128xf32>
    %32 = arith.addf %31, %30 : vector<16x128xf32>
    %c0_17 = arith.constant 0 : index
    %c0_18 = arith.constant 0 : index
    %33 = vector.load %arg5[%c0_17, %c0_18] : memref<16x128xf32, #tpu.memory_space<vmem>>, vector<16x128xf32>
    tpu.vector_store %arg5[%c0_17, %c0_18], %32 {strides = array<i32>} : memref<16x128xf32, #tpu.memory_space<vmem>>, vector<16x128xf32>,
    %c0_i32_19 = arith.constant 0 : i32
    %34 = arith.cmpi eq, %arg1, %c0_i32_19 : i32
    %35 = arith.extui %34 : i1 to i32
    %c0_i32_20 = arith.constant 0 : i32
    %36 = arith.cmpi ne, %35, %c0_i32_20 : i32
    scf.if %36 {
      %c0_21 = arith.constant 0 : index
      %c0_22 = arith.constant 0 : index
      %37 = vector.load %arg5[%c0_21, %c0_22] : memref<16x128xf32, #tpu.memory_space<vmem>>, vector<16x128xf32>
      %38 = vector.shape_cast %37 : vector<16x128xf32> to vector<1x16x128xf32>
      %cst_23 = arith.constant dense<0.000000e+00> : vector<1xf32>
      %39 = vector.multi_reduction <add>, %38, %cst_23 [1, 2] : vector<1x16x128xf32> to vector<1xf32>
      %40 = vector.shape_cast %39 : vector<1xf32> to vector<1x1x1xf32>
      %41 = vector.extract %40[0, 0, 0] : f32 from vector<1x1x1xf32>
      %42 = vector.broadcast %41 : f32 to vector<1x1x1xf32>
      %c0_24 = arith.constant 0 : index
      %c0_25 = arith.constant 0 : index
      %c0_26 = arith.constant 0 : index
      %43 = vector.load %arg4[%c0_24, %c0_25, %c0_26] : memref<1x1x1xf32, #tpu.memory_space<vmem>>, vector<1x1x1xf32>
      tpu.vector_store %arg4[%c0_24, %c0_25, %c0_26], %42 {strides = array<i32>} : memref<1x1x1xf32, #tpu.memory_space<vmem>>, vector<1x1x1xf32>,
    } else {
    }
    return
  }
  func.func @transform_0(%arg0: i32, %arg1: i32) -> (i32, i32, i32) {
    %c1_i32 = arith.constant 1 : i32
    %0 = arith.muli %arg0, %c1_i32 : i32
    %1 = arith.addi %0, %arg1 : i32
    %c0_i32 = arith.constant 0 : i32
    %c0_i32_0 = arith.constant 0 : i32
    %c0_i32_1 = arith.constant 0 : i32
    return %c0_i32, %1, %c0_i32_0 : i32, i32, i32
  }
  func.func @transform_1(%arg0: i32, %arg1: i32) -> (i32, i32, i32) {
    %c1_i32 = arith.constant 1 : i32
    %0 = arith.muli %arg0, %c1_i32 : i32
    %1 = arith.addi %0, %arg1 : i32
    %c0_i32 = arith.constant 0 : i32
    %c0_i32_0 = arith.constant 0 : i32
    %c0_i32_1 = arith.constant 0 : i32
    return %c0_i32, %1, %c0_i32_0 : i32, i32, i32
  }
  func.func @transform_2(%arg0: i32, %arg1: i32) -> (i32, i32, i32) {
    %c0_i32 = arith.constant 0 : i32
    %c0_i32_0 = arith.constant 0 : i32
    %c0_i32_1 = arith.constant 0 : i32
    return %arg0, %c0_i32, %c0_i32_0 : i32, i32, i32
  }
}

</mosaic_0001>

<llo_original>
// kernel: _quantile_loss_impl.1
$region0: #{_quantile_loss_impl.1}
  #allocation0 [shape = 'u32[]', space=smem, size = 0x4, offset = 0x4, fixed_abs, tag = 'smem constant byte address 0x4 - core index']
  #allocation1 [shape = 'u32[144,128]{1,0:T(1,128)}', space=vmem, size = 0x12000, scoped, tag = 'internal scratch']
  #allocation2 [shape = 'f32[16,128]{1,0:T(8,128)}', space=vmem, size = 0x2000, scoped, tag = 'scratch operand']
  %s0 = inlined_call_operand.vmem [shape: f32[3,32,128], index: 0, kind: input, shape index: {}]
  %s1 = inlined_call_operand.vmem [shape: f32[1,32,128], index: 1, kind: input, shape index: {}]
  %s2 = inlined_call_operand.vmem [shape: f32[2,1,1], index: 2, kind: output, shape index: {}]
  %s3 = sld [smem:[#allocation0]]
  $region87: #{_quantile_loss_impl.1} parent=0
    _
  %s5 = ssub.s32 1, %s3
  %s6 = scalar_select 0, %s5, %s3
  $region1: #{_quantile_loss_impl.1} parent=0
    #allocation3 [shape = 'u8[49152]{0}', space=vmem, size = 0xc000, scoped, tag = 'input window, operand 0']
    loop: start=0, step=1, limit=4
    $region2: #{_quantile_loss_impl.1} parent=1 // loop_pre_header
      _
    $region3: #{_quantile_loss_impl.1} parent=1 // loop_header
      %s8 = sphi 0, %s12
      %p9 = scmp.ge.s32.totalorder %s8, 4
      %s15 = sphi 0, %s27
      %s16 = sphi 0, %s23
      %s17 = sphi 0, %s15
      %s18 = sphi 0, %s16
      %s19 = sphi 0, %s17
      %s20 = sphi 0, %s18
      %s32 = sphi 0, %s34
      %s35 = sphi 0, %s32
      %s36 = sphi 0, %s35
      %s52 = sphi 0, %s36
      %s60 = sphi 0, %s62
      %s63 = sphi 0, %s60
      %s64 = sphi 0, %s63
      %s80 = sphi 0, %s64
      %s86 = sphi 0, %s88
      %s89 = sphi 0, %s86
      %s90 = sphi 0, %s89
      %s106 = sphi 0, %s90
    $region4: #{_quantile_loss_impl.1} parent=1 // loop_header_branch
      %11 = sbr.rel (%p9) target = $region8
    $region5: #{_quantile_loss_impl.1} parent=1 // loop_body
      %s13 = ssub.s32 %s8, 1
      %s14 = ssub.s32 %s8, 2
      %s21 = sadd.s32 1, %s16
      %p22 = scmp.ge.s32.totalorder %s21, 1
      %s23 = scalar_select %p22, 0, %s21
      %s24 = sadd.s32 1, %s15
      %s25 = scalar_select %p22, %s24, %s15
      %p26 = scmp.ge.s32.totalorder %s25, 2
      %s27 = scalar_select %p26, 0, %s25
      %s28 = sadd.s32 %s15, %s16
      %s29 = sadd.s32 %s27, %s23
      %s30 = ssub.s32 %s28, %s29
      %p31 = scmp.eq.s32.totalorder %s30, 0
      %s33 = sadd.s32 %s32, 1
      %s34 = scalar_select %p31, %s32, %s33
      %p37 = pneg %p31
      %p38 = scmp.eq.s32.totalorder %s8, 1
      %p39 = por %p37, %p38
      %p40 = scmp.ne.s32.totalorder %s32, %s35
      %p41 = scmp.eq.s32.totalorder %s8, 0
      %p42 = por %p40, %p41
      %p43 = scmp.ne.s32.totalorder %s32, %s35
      %p44 = scmp.eq.s32.totalorder %s13, 1
      %p45 = por %p43, %p44
      %p46 = scmp.ne.s32.totalorder %s35, %s36
      %p47 = scmp.eq.s32.totalorder %s13, 0
      %p48 = por %p46, %p47
      %p49 = scmp.ne.s32.totalorder %s35, %s36
      %p50 = scmp.eq.s32.totalorder %s14, 1
      %p51 = por %p49, %p50
      %p53 = scmp.ne.s32.totalorder %s36, %s52
      %p54 = scmp.eq.s32.totalorder %s14, 0
      %p55 = por %p53, %p54
      %s56 = sadd.s32 %s15, %s16
      %s57 = sadd.s32 %s27, %s23
      %s58 = ssub.s32 %s56, %s57
      %p59 = scmp.eq.s32.totalorder %s58, 0
      %s61 = sadd.s32 %s60, 1
      %s62 = scalar_select %p59, %s60, %s61
      %p65 = pneg %p59
      %p66 = scmp.eq.s32.totalorder %s8, 1
      %p67 = por %p65, %p66
      %p68 = scmp.ne.s32.totalorder %s60, %s63
      %p69 = scmp.eq.s32.totalorder %s8, 0
      %p70 = por %p68, %p69
      %p71 = scmp.ne.s32.totalorder %s60, %s63
      %p72 = scmp.eq.s32.totalorder %s13, 1
      %p73 = por %p71, %p72
      %p74 = scmp.ne.s32.totalorder %s63, %s64
      %p75 = scmp.eq.s32.totalorder %s13, 0
      %p76 = por %p74, %p75
      %p77 = scmp.ne.s32.totalorder %s63, %s64
      %p78 = scmp.eq.s32.totalorder %s14, 1
      %p79 = por %p77, %p78
      %p81 = scmp.ne.s32.totalorder %s64, %s80
      %p82 = scmp.eq.s32.totalorder %s14, 0
      %p83 = por %p81, %p82
      %s84 = ssub.s32 %s15, %s27
      %p85 = scmp.eq.s32.totalorder %s84, 0
      %s87 = sadd.s32 %s86, 1
      %s88 = scalar_select %p85, %s86, %s87
      %p91 = pneg %p85
      %p92 = scmp.eq.s32.totalorder %s8, 1
      %p93 = por %p91, %p92
      %p94 = scmp.ne.s32.totalorder %s86, %s89
      %p95 = scmp.eq.s32.totalorder %s8, 0
      %p96 = por %p94, %p95
      %p97 = scmp.ne.s32.totalorder %s86, %s89
      %p98 = scmp.eq.s32.totalorder %s13, 1
      %p99 = por %p97, %p98
      %p100 = scmp.ne.s32.totalorder %s89, %s90
      %p101 = scmp.eq.s32.totalorder %s13, 0
      %p102 = por %p100, %p101
      %p103 = scmp.ne.s32.totalorder %s89, %s90
      %p104 = scmp.eq.s32.totalorder %s14, 1
      %p105 = por %p103, %p104
      %p107 = scmp.ne.s32.totalorder %s90, %s106
      %p108 = scmp.eq.s32.totalorder %s14, 0
      %p109 = por %p107, %p108
      %p110 = scmp.le.s32.totalorder 1, %s8
      %p111 = scmp.lt.s32.totalorder %s8, 3
      %p112 = pnand %p110, %p111
      %p113 = pneg %p112
      // Predicated region
      $region9: #{_quantile_loss_impl.1} parent=5 // pred_check
        _
      $region10: #{_quantile_loss_impl.1} parent=5 // pred_check_branch
        %115 = sbr.rel (%p112) target = $region12
      $region11: #{_quantile_loss_impl.1} parent=5 // pred_region
        %s116 = ssub.s32 %s8, 1
      $region12: #{_quantile_loss_impl.1} parent=5 // pred_fallthru
        _
      %p117 = scmp.lt.s32.totalorder %s8, 2
      // Predicated region
      $region13: #{_quantile_loss_impl.1} parent=5 // pred_check
        %p118 = pneg %p117
      $region14: #{_quantile_loss_impl.1} parent=5 // pred_check_branch
        %120 = sbr.rel (%p118) target = $region16
      $region15: #{_quantile_loss_impl.1} parent=5 // pred_region
        // Predicated region
        $region17: #{_quantile_loss_impl.1} parent=15 // pred_check
          %p121 = pneg %p42
        $region18: #{_quantile_loss_impl.1} parent=15 // pred_check_branch
          %123 = sbr.rel (%p121) target = $region20
        $region19: #{_quantile_loss_impl.1} parent=15 // pred_region
          %s124 = sand.u32 %s32, 1
          %s125 = sand.u32 %s32, 1
          %s126 = smul.addr %s125, 48
          %s127 = scalar_lea.vmem [#allocation3], %s126
          %s128 = sadd.s32 %s15, %s16
          %s129 = smul.u32 2, %s128
          %s130 = smul.addr %s129, 8
          %s131 = scalar_lea.vmem %s0, %s130
          // Predicated region
          $region21: #{_quantile_loss_impl.1} parent=19 // pred_check
            _
          $region22: #{_quantile_loss_impl.1} parent=19 // pred_check_branch
            %133 = sbr.rel (0) target = $region24
          $region23: #{_quantile_loss_impl.1} parent=19 // pred_region
            // Predicated region
            $region25: #{_quantile_loss_impl.1} parent=23 // pred_check
              _
            $region26: #{_quantile_loss_impl.1} parent=23 // pred_check_branch
              %135 = sbr.rel (0) target = $region28
            $region27: #{_quantile_loss_impl.1} parent=23 // pred_region
              // Predicated region
              $region40: #{_quantile_loss_impl.1} parent=27 // pred_check
                _
              $region41: #{_quantile_loss_impl.1} parent=27 // pred_check_branch
                %160 = sbr.rel (0) target = $region43
              $region42: #{_quantile_loss_impl.1} parent=27 // pred_region
                loop: start=0, step=1, limit=1
                $region44: #{_quantile_loss_impl.1} parent=42 // loop_pre_header
                  _
                $region45: #{_quantile_loss_impl.1} parent=42 // loop_header
                  %s162 = sphi 0, %s166
                  %p163 = scmp.ge.s32.totalorder %s162, 1
                  %s167 = sphi %s131, %s131
                  %s168 = sphi %s127, %s127
                $region46: #{_quantile_loss_impl.1} parent=42 // loop_header_branch
                  %165 = sbr.rel (%p163) target = $region50
                $region47: #{_quantile_loss_impl.1} parent=42 // loop_body
                  %v169 = vld [vmem:[%s167] sm:$0xff]
                  %170 = vst [vmem:[%s168] sm:$0xff] %v169
                  %v171 = vld [vmem:[%s167 + $0x8] sm:$0xff]
                  %172 = vst [vmem:[%s168 + $0x8] sm:$0xff] %v171
                  %v173 = vld [vmem:[%s167 + $0x20] sm:$0xff]
                  %174 = vst [vmem:[%s168 + $0x10] sm:$0xff] %v173
                  %v175 = vld [vmem:[%s167 + $0x28] sm:$0xff]
                  %176 = vst [vmem:[%s168 + $0x18] sm:$0xff] %v175
                  %v177 = vld [vmem:[%s167 + $0x40] sm:$0xff]
                  %178 = vst [vmem:[%s168 + $0x20] sm:$0xff] %v177
                  %v179 = vld [vmem:[%s167 + $0x48] sm:$0xff]
                  %180 = vst [vmem:[%s168 + $0x28] sm:$0xff] %v179
                $region48: #{_quantile_loss_impl.1} parent=42 // loop_footer
                  %s166 = sadd.s32 1, %s162
                $region49: #{_quantile_loss_impl.1} parent=42 // loop_footer_branch
                  %161 = sbr.rel target = $region45
                $region50: #{_quantile_loss_impl.1} parent=42 // loop_exit
                  _
              $region43: #{_quantile_loss_impl.1} parent=27 // pred_fallthru
                _
              // Predicated region
              $region51: #{_quantile_loss_impl.1} parent=27 // pred_check
                _
              $region52: #{_quantile_loss_impl.1} parent=27 // pred_check_branch
                %182 = sbr.rel target = $region54
              $region53: #{_quantile_loss_impl.1} parent=27 // pred_region
                _
              $region54: #{_quantile_loss_impl.1} parent=27 // pred_fallthru
                _
            $region28: #{_quantile_loss_impl.1} parent=23 // pred_fallthru
              _
            // Predicated region
            $region29: #{_quantile_loss_impl.1} parent=23 // pred_check
              _
            $region30: #{_quantile_loss_impl.1} parent=23 // pred_check_branch
              %137 = sbr.rel target = $region32
            $region31: #{_quantile_loss_impl.1} parent=23 // pred_region
              loop: start=0, step=1, limit=1
              $region33: #{_quantile_loss_impl.1} parent=31 // loop_pre_header
                _
              $region34: #{_quantile_loss_impl.1} parent=31 // loop_header
                %s140 = sphi 0, %s144
                %p141 = scmp.ge.s32.totalorder %s140, 1
                %s145 = sphi %s131, %s131
                %s146 = sphi %s127, %s127
              $region35: #{_quantile_loss_impl.1} parent=31 // loop_header_branch
                %143 = sbr.rel (%p141) target = $region39
              $region36: #{_quantile_loss_impl.1} parent=31 // loop_body
                %v147 = vld [vmem:[%s145] sm:$0xff]
                %148 = vst [vmem:[%s146] sm:$0xff] %v147
                %v149 = vld [vmem:[%s145 + $0x8] sm:$0xff]
                %150 = vst [vmem:[%s146 + $0x8] sm:$0xff] %v149
                %v151 = vld [vmem:[%s145 + $0x20] sm:$0xff]
                %152 = vst [vmem:[%s146 + $0x10] sm:$0xff] %v151
                %v153 = vld [vmem:[%s145 + $0x28] sm:$0xff]
                %154 = vst [vmem:[%s146 + $0x18] sm:$0xff] %v153
                %v155 = vld [vmem:[%s145 + $0x40] sm:$0xff]
                %156 = vst [vmem:[%s146 + $0x20] sm:$0xff] %v155
                %v157 = vld [vmem:[%s145 + $0x48] sm:$0xff]
                %158 = vst [vmem:[%s146 + $0x28] sm:$0xff] %v157
              $region37: #{_quantile_loss_impl.1} parent=31 // loop_footer
                %s144 = sadd.s32 1, %s140
              $region38: #{_quantile_loss_impl.1} parent=31 // loop_footer_branch
                %139 = sbr.rel target = $region34
              $region39: #{_quantile_loss_impl.1} parent=31 // loop_exit
                _
            $region32: #{_quantile_loss_impl.1} parent=23 // pred_fallthru
              _
          $region24: #{_quantile_loss_impl.1} parent=19 // pred_fallthru
            _
          %183 = vnop
        $region20: #{_quantile_loss_impl.1} parent=15 // pred_fallthru
          _
        // Predicated region
        $region55: #{_quantile_loss_impl.1} parent=15 // pred_check
          %p184 = pneg %p70
        $region56: #{_quantile_loss_impl.1} parent=15 // pred_check_branch
          %186 = sbr.rel (%p184) target = $region58
        $region57: #{_quantile_loss_impl.1} parent=15 // pred_region
          %s187 = sadd.s32 %s15, %s16
          %s188 = smul.u32 2, %s187
          %p189 = scmp.lt.s32.totalorder %s188, 3
          %s190 = scalar_select %p189, %s188, 3
          %s191 = smul.addr %s190, 8
          %s192 = scalar_lea.vmem %s1, %s191
          %s193 = sadd.s32 %s15, %s16
          %s194 = smul.u32 2, %s193
        $region58: #{_quantile_loss_impl.1} parent=15 // pred_fallthru
          _
      $region16: #{_quantile_loss_impl.1} parent=5 // pred_fallthru
        _
      %p195 = scmp.le.s32.totalorder 1, %s8
      %p196 = scmp.lt.s32.totalorder %s8, 3
      %p197 = pnand %p195, %p196
      %p198 = pneg %p197
      // Predicated region
      $region59: #{_quantile_loss_impl.1} parent=5 // pred_check
        _
      $region60: #{_quantile_loss_impl.1} parent=5 // pred_check_branch
        %200 = sbr.rel (%p197) target = $region62
      $region61: #{_quantile_loss_impl.1} parent=5 // pred_region
        %s201 = ssub.s32 %s8, 1
        %s202 = sand.u32 %s35, 1
        %s203 = sand.u32 %s35, 1
        %s204 = smul.addr %s203, 48
        %s205 = scalar_lea.vmem [#allocation3], %s204
        // Predicated region
        $region63: #{_quantile_loss_impl.1} parent=61 // pred_check
          %p206 = pneg %p48
        $region64: #{_quantile_loss_impl.1} parent=61 // pred_check_branch
          %208 = sbr.rel (%p206) target = $region66
        $region65: #{_quantile_loss_impl.1} parent=61 // pred_region
          _
        $region66: #{_quantile_loss_impl.1} parent=61 // pred_fallthru
          _
        %s209 = sand.u32 %s35, 1
        %s210 = sand.u32 %s35, 1
        %s211 = smul.addr %s210, 48
        %s212 = scalar_lea.vmem [#allocation3], %s211
        %p213 = pneg %p48
        %p214 = pneg %p45
        %s215 = sadd.s32 %s17, %s18
        %s216 = smul.u32 2, %s215
        %p217 = scmp.lt.s32.totalorder %s216, 3
        %s218 = scalar_select %p217, %s216, 3
        %s219 = smul.addr %s218, 8
        %s220 = scalar_lea.vmem %s1, %s219
        %p221 = pneg %p76
        %p222 = pneg %p73
        %p223 = pneg %p102
        %p224 = pneg %p99
        %p225 = scmp.lt.s32.totalorder %s17, 1
        %s226 = scalar_select %p225, %s17, 1
        %s227 = scalar_lea.vmem %s2, %s226
        %s228 = sadd.s32 %s17, %s18
        %s229 = smul.u32 2, %s228
        %s230 = sadd.s32 %s17, %s18
        %s231 = smul.u32 2, %s230
        %p232 = scmp.lt.s32.totalorder %s231, 3
        %s233 = scalar_select %p232, %s231, 3
        %s234 = smul.addr %s233, 8
        %s235 = scalar_lea.vmem %s1, %s234
        %s236 = sadd.s32 %s17, %s18
        %s237 = smul.u32 2, %s236
        %p238 = scmp.lt.s32.totalorder %s17, 1
        %s239 = scalar_select %p238, %s17, 1
        %s240 = scalar_lea.vmem %s2, %s239
        %p241 = scmp.eq.s32.totalorder %s18, 0
        // Predicated region
        $region67: #{_quantile_loss_impl.1} parent=61 // pred_check
          %p242 = pneg %p241
        $region68: #{_quantile_loss_impl.1} parent=61 // pred_check_branch
          %244 = sbr.rel (%p242) target = $region70
        $region69: #{_quantile_loss_impl.1} parent=61 // pred_region
          %245 = vst [vmem:[#allocation2] sm:$0xff] 0.0
          %246 = vst [vmem:[#allocation2 + $0x8] sm:$0xff] 0.0
        $region70: #{_quantile_loss_impl.1} parent=61 // pred_fallthru
          _
        %v247 = vld [vmem:[%s235] sm:$0xff]
        %v248 = vld [vmem:[%s235 + $0x8] sm:$0xff]
        %v249 = vld [vmem:[%s205] sm:$0xff]
        %v250 = vld [vmem:[%s205 + $0x8] sm:$0xff]
        %v251 = vsub.f32 %v247, %v249
        %v252 = vsub.f32 %v248, %v250
        %v253 = vmul.f32 %v251, -0.9
        %v254 = vmul.f32 %v252, -0.9
        %v255 = vmul.f32 %v251, 0.1
        %v256 = vmul.f32 %v252, 0.1
        %v257 = vmax.f32 %v253, %v255
        %v258 = vmax.f32 %v254, %v256
        %s259 = scalar_lea.vmem %s205, 16 [#allocation3]
        %v260 = vld [vmem:[%s259] sm:$0xff]
        %v261 = vld [vmem:[%s259 + $0x8] sm:$0xff]
        %v262 = vsub.f32 %v247, %v260
        %v263 = vsub.f32 %v248, %v261
        %v264 = vmul.f32 %v262, -0.5
        %v265 = vmul.f32 %v263, -0.5
        %v266 = vmul.f32 %v262, 0.5
        %v267 = vmul.f32 %v263, 0.5
        %v268 = vmax.f32 %v264, %v266
        %v269 = vmax.f32 %v265, %v267
        %v270 = vadd.f32 %v257, %v268
        %v271 = vadd.f32 %v258, %v269
        %s272 = scalar_lea.vmem %s205, 32 [#allocation3]
        %v273 = vld [vmem:[%s272] sm:$0xff]
        %v274 = vld [vmem:[%s272 + $0x8] sm:$0xff]
        %v275 = vsub.f32 %v247, %v273
        %v276 = vsub.f32 %v248, %v274
        %v277 = vmul.f32 %v275, -0.1
        %v278 = vmul.f32 %v276, -0.1
        %v279 = vmul.f32 %v275, 0.9
        %v280 = vmul.f32 %v276, 0.9
        %v281 = vmax.f32 %v277, %v279
        %v282 = vmax.f32 %v278, %v280
        %v283 = vadd.f32 %v270, %v281
        %v284 = vadd.f32 %v271, %v282
        %v285 = vld [vmem:[#allocation2] sm:$0xff]
        %v286 = vld [vmem:[#allocation2 + $0x8] sm:$0xff]
        %v287 = vadd.f32 %v285, %v283
        %v288 = vadd.f32 %v286, %v284
        %289 = vst [vmem:[#allocation2] sm:$0xff] %v287
        %290 = vst [vmem:[#allocation2 + $0x8] sm:$0xff] %v288
        // Predicated region
        $region71: #{_quantile_loss_impl.1} parent=61 // pred_check
          %p291 = pneg %p241
        $region72: #{_quantile_loss_impl.1} parent=61 // pred_check_branch
          %293 = sbr.rel (%p291) target = $region74
        $region73: #{_quantile_loss_impl.1} parent=61 // pred_region
          %v294 = vld [vmem:[#allocation2] sm:$0xff]
          %v295 = vld [vmem:[#allocation2 + $0x8] sm:$0xff]
          %v296 = vadd.f32 %v294, %v295
          %297 = vadd.xlane.f32.xlu0 %v296
          %v298 = vpop.xlane.xlu0 %297
          %v299 = vrot.slane %v298, 4
          %v300 = vadd.f32 %v298, %v299
          %v301 = vrot.slane %v300, 2
          %v302 = vadd.f32 %v300, %v301
          %v303 = vrot.slane %v302, 1
          %v304 = vadd.f32 %v302, %v303
          %s305 = vtos %v304
          %v306 = vstv %s305
          %vm307 = vcmask 0
          %308 = vst.msk [vmem:[%s240] sm:$0x1] %vm307, %v306
        $region74: #{_quantile_loss_impl.1} parent=61 // pred_fallthru
          _
        %p309 = scmp.lt.s32.totalorder %s17, 1
        %s310 = scalar_select %p309, %s17, 1
        %s311 = scalar_lea.vmem %s2, %s310
        // Predicated region
        $region75: #{_quantile_loss_impl.1} parent=61 // pred_check
          %p312 = pneg %p99
        $region76: #{_quantile_loss_impl.1} parent=61 // pred_check_branch
          %314 = sbr.rel (%p312) target = $region78
        $region77: #{_quantile_loss_impl.1} parent=61 // pred_region
          _
        $region78: #{_quantile_loss_impl.1} parent=61 // pred_fallthru
          _
      $region62: #{_quantile_loss_impl.1} parent=5 // pred_fallthru
        _
      %p315 = scmp.le.s32.totalorder 2, %s8
      // Predicated region
      $region79: #{_quantile_loss_impl.1} parent=5 // pred_check
        %p316 = pneg %p315
      $region80: #{_quantile_loss_impl.1} parent=5 // pred_check_branch
        %318 = sbr.rel (%p316) target = $region82
      $region81: #{_quantile_loss_impl.1} parent=5 // pred_region
        %s319 = ssub.s32 %s8, 2
        // Predicated region
        $region83: #{_quantile_loss_impl.1} parent=81 // pred_check
          %p320 = pneg %p105
        $region84: #{_quantile_loss_impl.1} parent=81 // pred_check_branch
          %322 = sbr.rel (%p320) target = $region86
        $region85: #{_quantile_loss_impl.1} parent=81 // pred_region
          %p323 = scmp.lt.s32.totalorder %s19, 1
          %s324 = scalar_select %p323, %s19, 1
          %s325 = scalar_lea.vmem %s2, %s324
        $region86: #{_quantile_loss_impl.1} parent=81 // pred_fallthru
          _
      $region82: #{_quantile_loss_impl.1} parent=5 // pred_fallthru
        _
    $region6: #{_quantile_loss_impl.1} parent=1 // loop_footer
      %s12 = sadd.s32 1, %s8
    $region7: #{_quantile_loss_impl.1} parent=1 // loop_footer_branch
      %7 = sbr.rel target = $region3
    $region8: #{_quantile_loss_impl.1} parent=1 // loop_exit
      _

</llo_original>
